<compile_context>
chip_gen: v5e
topology: v5e:2x2
jax: 0.10.0
libtpu: 0.0.40
codegen_flags: <defaults>
</compile_context>

<pallas_src>
import functools

import jax
import jax.numpy as jnp
from jax.experimental import pallas as pl
from jax.experimental.pallas import tpu as pltpu


def _center_loss_kernel(
    labels_ref,      # SMEM (B_pad,) int32   — scalar-prefetched labels
    x_ref,           # VMEM (Bt, D)          — current batch tile of features
    centers_ref,     # VMEM (C, D)           — full centers table (resident)
    out_ref,         # SMEM (1, 1) f32       — final scalar loss
    cbuf,            # VMEM (Bt, D) scratch  — gathered centers for this tile
    acc_ref,         # SMEM (1,) f32 scratch — running sum across grid steps
    *,
    batch_size,
    num_classes,
    block_rows,
):
    tile = pl.program_id(0)
    row0 = tile * block_rows

    @pl.when(tile == 0)
    def _():
        acc_ref[0] = jnp.float32(0.0)

    # Gather centers[labels[row]] for every row of this batch tile.  Labels
    # come from SMEM; each row is a cheap dynamic-sublane VMEM load + store
    # (no per-row HBM DMAs).
    for r in range(block_rows):
        idx = labels_ref[row0 + r]
        cbuf[pl.ds(r, 1), :] = centers_ref[pl.ds(idx, 1), :]

    # Per-row squared distance to the labelled center (f32 accumulation).
    x = x_ref[...].astype(jnp.float32)           # (Bt, D)
    c = cbuf[...].astype(jnp.float32)            # (Bt, D)
    diff = x - c
    d = jnp.sum(diff * diff, axis=1, keepdims=True)       # (Bt, 1)
    d = jnp.clip(d, 1e-12, 1.0e12)

    # Mask out padded rows (when batch_size is not a multiple of block_rows).
    rows = jax.lax.broadcasted_iota(jnp.int32, d.shape, 0) + row0
    d = jnp.where(rows < batch_size, d, jnp.float32(0.0))

    acc_ref[0] += jnp.sum(d)

    @pl.when(tile == pl.num_programs(0) - 1)
    def _():
        # Every masked-out (non-label) entry contributes exactly
        # clamp(0, 1e-12, 1e12) = 1e-12 to the reference sum.
        mask_fill = jnp.float32(batch_size * (num_classes - 1) * 1e-12)
        out_ref[0, 0] = (acc_ref[0] + mask_fill) / jnp.float32(batch_size)


def center_loss(x, centers, labels):
    """Pallas CenterLoss forward.

    Args:
      x:       (batch, feat_dim) float array (f32 or bf16 — kept native).
      centers: (num_classes, feat_dim) float array.
      labels:  (batch,) integer array.
    Returns:
      scalar float32 loss.
    """
    batch_size, feat_dim = x.shape
    num_classes, feat_dim_c = centers.shape
    assert feat_dim_c == feat_dim

    # Batch tile: multiple of 8 sublanes, capped at 128 rows per grid step.
    bt = min(128, ((batch_size + 7) // 8) * 8)
    num_tiles = (batch_size + bt - 1) // bt
    b_pad = num_tiles * bt

    labels_i32 = labels.astype(jnp.int32)
    if b_pad != batch_size:
        x_in = jnp.pad(x, ((0, b_pad - batch_size), (0, 0)))
        labels_in = jnp.pad(labels_i32, (0, b_pad - batch_size))
    else:
        x_in, labels_in = x, labels_i32

    kernel = functools.partial(
        _center_loss_kernel,
        batch_size=batch_size,
        num_classes=num_classes,
        block_rows=bt,
    )

    grid_spec = pltpu.PrefetchScalarGridSpec(
        num_scalar_prefetch=1,
        grid=(num_tiles,),
        in_specs=[
            # x: auto-pipelined batch tiles (lane dim = full feat_dim).
            pl.BlockSpec((bt, feat_dim), lambda i, lbl: (i, 0)),
            # centers: full table, constant block index -> DMA'd into VMEM
            # once and kept resident across all grid steps.
            pl.BlockSpec((num_classes, feat_dim), lambda i, lbl: (0, 0)),
        ],
        out_specs=pl.BlockSpec(
            (1, 1), lambda i, lbl: (0, 0), memory_space=pltpu.MemorySpace.SMEM
        ),
        scratch_shapes=[
            pltpu.VMEM((bt, feat_dim), centers.dtype),
            pltpu.SMEM((1,), jnp.float32),
        ],
    )

    out = pl.pallas_call(
        kernel,
        out_shape=jax.ShapeDtypeStruct((1, 1), jnp.float32),
        grid_spec=grid_spec,
        compiler_params=pltpu.CompilerParams(
            # Grid axis carries the running-sum accumulator -> reduction axis.
            dimension_semantics=("arbitrary",),
            vmem_limit_bytes=64 << 20,
        ),
    )(labels_in, x_in, centers)
    return out[0, 0]


def center_loss_ref(x, centers, labels):
    """Pure-JAX reference mirroring the PyTorch forward exactly."""
    batch_size = x.shape[0]
    num_classes = centers.shape[0]
    x = x.astype(jnp.float32)
    centers = centers.astype(jnp.float32)
    distmat = (
        jnp.sum(x**2, axis=1, keepdims=True)
        + jnp.sum(centers**2, axis=1, keepdims=True).T
        - 2.0 * x @ centers.T
    )
    classes = jnp.arange(num_classes, dtype=jnp.int32)
    mask = labels.astype(jnp.int32)[:, None] == classes[None, :]
    dist = distmat * mask.astype(jnp.float32)
    return jnp.sum(jnp.clip(dist, 1e-12, 1.0e12)) / batch_size


if __name__ == "__main__":
    # Deterministic synthetic parameters / inputs
    # (module __init__: centers ~ randn(num_classes, feat_dim)).
    num_classes = 10
    feat_dim = 32
    batch = 8

    key = jax.random.PRNGKey(0)
    k_x, k_c, k_l = jax.random.split(key, 3)
    x = jax.random.normal(k_x, (batch, feat_dim), dtype=jnp.float32)
    centers = jax.random.normal(k_c, (num_classes, feat_dim), dtype=jnp.float32)
    labels = jax.random.randint(k_l, (batch,), 0, num_classes, dtype=jnp.int32)

    loss = center_loss(x, centers, labels)
    jax.block_until_ready(loss)

    ref = center_loss_ref(x, centers, labels)
    # Gathered ||x - c||^2 form avoids the cancellation of the expanded form;
    # tolerances are loosened slightly vs. the expanded-form reference.
    assert jnp.allclose(loss, ref, rtol=1e-4, atol=1e-4), (loss, ref)

    print("KERNEL_OK")
</pallas_src>

<mosaic_0001>
module attributes {stable_mosaic.version = 11 : i64} {
  func.func @_center_loss_kernel(%arg0: i32, %arg1: memref<8xi32, #tpu.memory_space<smem>>, %arg2: memref<8x32xf32, #tpu.memory_space<vmem>>, %arg3: memref<10x32xf32, #tpu.memory_space<vmem>>, %arg4: memref<1x1xf32, #tpu.memory_space<smem>>, %arg5: memref<8x32xf32, #tpu.memory_space<vmem>>, %arg6: memref<1xf32, #tpu.memory_space<smem>>) attributes {dimension_semantics = [#tpu.dimension_semantics<arbitrary>], iteration_bounds = array<i64: 1>, scalar_prefetch = 1 : i64, scratch_operands = 2 : i64, tpu.core_type = #tpu.core_type<tc>, window_params = [{transform_indices = @transform_0, window_bounds = array<i64: 8, 32>}, {pipeline_mode = #tpu.pipeline_mode<synchronous>, transform_indices = @transform_1, window_bounds = array<i64: 10, 32>}, {transform_indices = @transform_2, window_bounds = array<i64: 1, 1>}]} {
    %c8_i32 = arith.constant 8 : i32
    %0 = arith.muli %arg0, %c8_i32 : i32
    %c0_i32 = arith.constant 0 : i32
    %1 = arith.cmpi eq, %arg0, %c0_i32 : i32
    %2 = arith.extui %1 : i1 to i32
    %c0_i32_0 = arith.constant 0 : i32
    %3 = arith.cmpi ne, %2, %c0_i32_0 : i32
    scf.if %3 {
      %cst_31 = arith.constant 0.000000e+00 : f32
      %c0_32 = arith.constant 0 : index
      %79 = memref.load %arg6[%c0_32] : memref<1xf32, #tpu.memory_space<smem>>
      memref.store %cst_31, %arg6[%c0_32] : memref<1xf32, #tpu.memory_space<smem>>
    } else {
    }
    %c0_i32_1 = arith.constant 0 : i32
    %4 = arith.addi %0, %c0_i32_1 : i32
    %5 = arith.index_cast %4 : i32 to index
    %6 = memref.load %arg1[%5] : memref<8xi32, #tpu.memory_space<smem>>
    %7 = arith.index_cast %6 : i32 to index
    %c0 = arith.constant 0 : index
    %8 = vector.load %arg3[%7, %c0] : memref<10x32xf32, #tpu.memory_space<vmem>>, vector<1x32xf32>
    %c0_2 = arith.constant 0 : index
    %c0_3 = arith.constant 0 : index
    %9 = vector.load %arg5[%c0_2, %c0_3] : memref<8x32xf32, #tpu.memory_space<vmem>>, vector<1x32xf32>
    tpu.vector_store %arg5[%c0_2, %c0_3], %8 {strides = array<i32>} : memref<8x32xf32, #tpu.memory_space<vmem>>, vector<1x32xf32>,
    %c1_i32 = arith.constant 1 : i32
    %10 = arith.addi %0, %c1_i32 : i32
    %11 = arith.index_cast %10 : i32 to index
    %12 = memref.load %arg1[%11] : memref<8xi32, #tpu.memory_space<smem>>
    %13 = arith.index_cast %12 : i32 to index
    %c0_4 = arith.constant 0 : index
    %14 = vector.load %arg3[%13, %c0_4] : memref<10x32xf32, #tpu.memory_space<vmem>>, vector<1x32xf32>
    %c1 = arith.constant 1 : index
    %c0_5 = arith.constant 0 : index
    %15 = vector.load %arg5[%c1, %c0_5] : memref<8x32xf32, #tpu.memory_space<vmem>>, vector<1x32xf32>
    tpu.vector_store %arg5[%c1, %c0_5], %14 {strides = array<i32>} : memref<8x32xf32, #tpu.memory_space<vmem>>, vector<1x32xf32>,
    %c2_i32 = arith.constant 2 : i32
    %16 = arith.addi %0, %c2_i32 : i32
    %17 = arith.index_cast %16 : i32 to index
    %18 = memref.load %arg1[%17] : memref<8xi32, #tpu.memory_space<smem>>
    %19 = arith.index_cast %18 : i32 to index
    %c0_6 = arith.constant 0 : index
    %20 = vector.load %arg3[%19, %c0_6] : memref<10x32xf32, #tpu.memory_space<vmem>>, vector<1x32xf32>
    %c2 = arith.constant 2 : index
    %c0_7 = arith.constant 0 : index
    %21 = vector.load %arg5[%c2, %c0_7] : memref<8x32xf32, #tpu.memory_space<vmem>>, vector<1x32xf32>
    tpu.vector_store %arg5[%c2, %c0_7], %20 {strides = array<i32>} : memref<8x32xf32, #tpu.memory_space<vmem>>, vector<1x32xf32>,
    %c3_i32 = arith.constant 3 : i32
    %22 = arith.addi %0, %c3_i32 : i32
    %23 = arith.index_cast %22 : i32 to index
    %24 = memref.load %arg1[%23] : memref<8xi32, #tpu.memory_space<smem>>
    %25 = arith.index_cast %24 : i32 to index
    %c0_8 = arith.constant 0 : index
    %26 = vector.load %arg3[%25, %c0_8] : memref<10x32xf32, #tpu.memory_space<vmem>>, vector<1x32xf32>
    %c3 = arith.constant 3 : index
    %c0_9 = arith.constant 0 : index
    %27 = vector.load %arg5[%c3, %c0_9] : memref<8x32xf32, #tpu.memory_space<vmem>>, vector<1x32xf32>
    tpu.vector_store %arg5[%c3, %c0_9], %26 {strides = array<i32>} : memref<8x32xf32, #tpu.memory_space<vmem>>, vector<1x32xf32>,
    %c4_i32 = arith.constant 4 : i32
    %28 = arith.addi %0, %c4_i32 : i32
    %29 = arith.index_cast %28 : i32 to index
    %30 = memref.load %arg1[%29] : memref<8xi32, #tpu.memory_space<smem>>
    %31 = arith.index_cast %30 : i32 to index
    %c0_10 = arith.constant 0 : index
    %32 = vector.load %arg3[%31, %c0_10] : memref<10x32xf32, #tpu.memory_space<vmem>>, vector<1x32xf32>
    %c4 = arith.constant 4 : index
    %c0_11 = arith.constant 0 : index
    %33 = vector.load %arg5[%c4, %c0_11] : memref<8x32xf32, #tpu.memory_space<vmem>>, vector<1x32xf32>
    tpu.vector_store %arg5[%c4, %c0_11], %32 {strides = array<i32>} : memref<8x32xf32, #tpu.memory_space<vmem>>, vector<1x32xf32>,
    %c5_i32 = arith.constant 5 : i32
    %34 = arith.addi %0, %c5_i32 : i32
    %35 = arith.index_cast %34 : i32 to index
    %36 = memref.load %arg1[%35] : memref<8xi32, #tpu.memory_space<smem>>
    %37 = arith.index_cast %36 : i32 to index
    %c0_12 = arith.constant 0 : index
    %38 = vector.load %arg3[%37, %c0_12] : memref<10x32xf32, #tpu.memory_space<vmem>>, vector<1x32xf32>
    %c5 = arith.constant 5 : index
    %c0_13 = arith.constant 0 : index
    %39 = vector.load %arg5[%c5, %c0_13] : memref<8x32xf32, #tpu.memory_space<vmem>>, vector<1x32xf32>
    tpu.vector_store %arg5[%c5, %c0_13], %38 {strides = array<i32>} : memref<8x32xf32, #tpu.memory_space<vmem>>, vector<1x32xf32>,
    %c6_i32 = arith.constant 6 : i32
    %40 = arith.addi %0, %c6_i32 : i32
    %41 = arith.index_cast %40 : i32 to index
    %42 = memref.load %arg1[%41] : memref<8xi32, #tpu.memory_space<smem>>
    %43 = arith.index_cast %42 : i32 to index
    %c0_14 = arith.constant 0 : index
    %44 = vector.load %arg3[%43, %c0_14] : memref<10x32xf32, #tpu.memory_space<vmem>>, vector<1x32xf32>
    %c6 = arith.constant 6 : index
    %c0_15 = arith.constant 0 : index
    %45 = vector.load %arg5[%c6, %c0_15] : memref<8x32xf32, #tpu.memory_space<vmem>>, vector<1x32xf32>
    tpu.vector_store %arg5[%c6, %c0_15], %44 {strides = array<i32>} : memref<8x32xf32, #tpu.memory_space<vmem>>, vector<1x32xf32>,
    %c7_i32 = arith.constant 7 : i32
    %46 = arith.addi %0, %c7_i32 : i32
    %47 = arith.index_cast %46 : i32 to index
    %48 = memref.load %arg1[%47] : memref<8xi32, #tpu.memory_space<smem>>
    %49 = arith.index_cast %48 : i32 to index
    %c0_16 = arith.constant 0 : index
    %50 = vector.load %arg3[%49, %c0_16] : memref<10x32xf32, #tpu.memory_space<vmem>>, vector<1x32xf32>
    %c7 = arith.constant 7 : index
    %c0_17 = arith.constant 0 : index
    %51 = vector.load %arg5[%c7, %c0_17] : memref<8x32xf32, #tpu.memory_space<vmem>>, vector<1x32xf32>
    tpu.vector_store %arg5[%c7, %c0_17], %50 {strides = array<i32>} : memref<8x32xf32, #tpu.memory_space<vmem>>, vector<1x32xf32>,
    %c0_18 = arith.constant 0 : index
    %c0_19 = arith.constant 0 : index
    %52 = vector.load %arg2[%c0_18, %c0_19] : memref<8x32xf32, #tpu.memory_space<vmem>>, vector<8x32xf32>
    %c0_20 = arith.constant 0 : index
    %c0_21 = arith.constant 0 : index
    %53 = vector.load %arg5[%c0_20, %c0_21] : memref<8x32xf32, #tpu.memory_space<vmem>>, vector<8x32xf32>
    %54 = arith.subf %52, %53 : vector<8x32xf32>
    %55 = arith.mulf %54, %54 : vector<8x32xf32>
    %cst = arith.constant dense<0.000000e+00> : vector<8xf32>
    %56 = vector.multi_reduction <add>, %55, %cst [1] : vector<8x32xf32> to vector<8xf32>
    %57 = vector.shape_cast %56 : vector<8xf32> to vector<8x1xf32>
    %cst_22 = arith.constant 9.99999996E-13 : f32
    %cst_23 = arith.constant 9.99999995E+11 : f32
    %58 = vector.broadcast %cst_22 : f32 to vector<8x1xf32>
    %59 = arith.maximumf %58, %57 : vector<8x1xf32>
    %60 = vector.broadcast %cst_23 : f32 to vector<8x1xf32>
    %61 = arith.minimumf %60, %59 : vector<8x1xf32>
    %62 = tpu.iota {dimensions = array<i32: 0>} : vector<8x1xi32>
    %63 = vector.broadcast %0 : i32 to vector<8x1xi32>
    %64 = arith.addi %62, %63 : vector<8x1xi32>
    %c8_i32_24 = arith.constant 8 : i32
    %65 = vector.broadcast %c8_i32_24 : i32 to vector<8x1xi32>
    %66 = arith.cmpi slt, %64, %65 : vector<8x1xi32>
    %cst_25 = arith.constant 0.000000e+00 : f32
    %67 = vector.broadcast %cst_25 : f32 to vector<8x1xf32>
    %68 = arith.select %66, %61, %67 : vector<8x1xi1>, vector<8x1xf32>
    %c0_26 = arith.constant 0 : index
    %69 = memref.load %arg6[%c0_26] : memref<1xf32, #tpu.memory_space<smem>>
    %70 = vector.shape_cast %68 : vector<8x1xf32> to vector<1x8x1xf32>
    %cst_27 = arith.constant dense<0.000000e+00> : vector<1xf32>
    %71 = vector.multi_reduction <add>, %70, %cst_27 [1, 2] : vector<1x8x1xf32> to vector<1xf32>
    %72 = vector.shape_cast %71 : vector<1xf32> to vector<1x1x1xf32>
    %73 = vector.extract %72[0, 0, 0] : f32 from vector<1x1x1xf32>
    %74 = arith.addf %69, %73 : f32
    %c0_28 = arith.constant 0 : index
    %75 = memref.load %arg6[%c0_28] : memref<1xf32, #tpu.memory_space<smem>>
    memref.store %74, %arg6[%c0_28] : memref<1xf32, #tpu.memory_space<smem>>
    %c0_i32_29 = arith.constant 0 : i32
    %76 = arith.cmpi eq, %arg0, %c0_i32_29 : i32
    %77 = arith.extui %76 : i1 to i32
    %c0_i32_30 = arith.constant 0 : i32
    %78 = arith.cmpi ne, %77, %c0_i32_30 : i32
    scf.if %78 {
      %c0_31 = arith.constant 0 : index
      %79 = memref.load %arg6[%c0_31] : memref<1xf32, #tpu.memory_space<smem>>
      %cst_32 = arith.constant 7.200000e-11 : f32
      %80 = arith.addf %79, %cst_32 : f32
      %cst_33 = arith.constant 8.000000e+00 : f32
      %81 = arith.divf %80, %cst_33 : f32
      %c0_34 = arith.constant 0 : index
      %c0_35 = arith.constant 0 : index
      %82 = memref.load %arg4[%c0_34, %c0_35] : memref<1x1xf32, #tpu.memory_space<smem>>
      memref.store %81, %arg4[%c0_34, %c0_35] : memref<1x1xf32, #tpu.memory_space<smem>>
    } else {
    }
    return
  }
  func.func @transform_0(%arg0: i32, %arg1: memref<8xi32, #tpu.memory_space<smem>>) -> (i32, i32) {
    %c0_i32 = arith.constant 0 : i32
    %c0_i32_0 = arith.constant 0 : i32
    return %arg0, %c0_i32 : i32, i32
  }
  func.func @transform_1(%arg0: i32, %arg1: memref<8xi32, #tpu.memory_space<smem>>) -> (i32, i32) {
    %c0_i32 = arith.constant 0 : i32
    %c0_i32_0 = arith.constant 0 : i32
    %c0_i32_1 = arith.constant 0 : i32
    return %c0_i32, %c0_i32_0 : i32, i32
  }
  func.func @transform_2(%arg0: i32, %arg1: memref<8xi32, #tpu.memory_space<smem>>) -> (i32, i32) {
    %c0_i32 = arith.constant 0 : i32
    %c0_i32_0 = arith.constant 0 : i32
    %c0_i32_1 = arith.constant 0 : i32
    return %c0_i32, %c0_i32_0 : i32, i32
  }
}

</mosaic_0001>

<llo_original>
// kernel: tpu_custom_call.1
$region0: #{tpu_custom_call.1}
  #allocation0 [shape = 'u32[]', space=smem, size = 0x4, offset = 0x4, fixed_abs, tag = 'smem constant byte address 0x4 - core index']
  #allocation1 [shape = 'u32[72,128]{1,0:T(1,128)}', space=vmem, size = 0x9000, scoped, tag = 'internal scratch']
  #allocation2 [shape = 'f32[8,32]{1,0:T(8,128)}', space=vmem, size = 0x1000, scoped, tag = 'scratch operand']
  #allocation3 [shape = 'f32[1]{0:T(128)}', space=smem, size = 0x200, scoped, tag = 'scratch operand']
  #allocation4 [shape = 's32[1]{0}', space=sflag, size = 0x4, scoped, tag = 'scoped memory for tpu_custom_call.1']
  #allocation5 [shape = 'u8[512]{0}', space=smem, size = 0x200, scoped, tag = 'prefetched SMEM operand 0']
  %s0 = inlined_call_operand.hbm [shape: s32[8], index: 0, kind: input, shape index: {}]
  %s1 = inlined_call_operand.hbm [shape: f32[8,32], index: 1, kind: input, shape index: {}]
  %s2 = inlined_call_operand.hbm [shape: f32[10,32], index: 2, kind: input, shape index: {}]
  %s3 = inlined_call_operand.hbm [shape: f32[1,1], index: 3, kind: output, shape index: {}]
  %s4 = sld [smem:[#allocation0]]
  $region34: #{tpu_custom_call.1} parent=0
    _
  %s6 = ssub.s32 1, %s4
  %s7 = scalar_select 0, %s6, %s4
  %s9 = sshll.u32 %s0, 4
  %s10 = int_to_ptr.hbm [resolvable:$true] %s9
  %12 = dma.hbm_to_smem %s10, 16, [#allocation5], [#allocation4]
  %14 = dma.done [#allocation4], 16
  %15 = sfence
  $region1: #{tpu_custom_call.1} parent=0
    #allocation6 [shape = 'u8[4096]{0}', space=vmem, size = 0x1000, scoped, tag = 'input window, operand 1, single buffered']
    #allocation7 [shape = 's32[1]{0}', space=sflag, size = 0x4, scoped, tag = 'scoped memory for tpu_custom_call.1']
    #allocation8 [shape = 's32[1]{0}', space=sflag, size = 0x4, scoped, tag = 'scoped memory for tpu_custom_call.1']
    #allocation9 [shape = 'u8[8192]{0}', space=vmem, size = 0x2000, scoped, tag = 'input window, operand 2, single buffered']
    #allocation10 [shape = 's32[1]{0}', space=sflag, size = 0x4, scoped, tag = 'scoped memory for tpu_custom_call.1']
    #allocation11 [shape = 'u8[512]{0}', space=smem, size = 0x200, scoped, tag = 'output window, operand 0, single buffered']
    %16 = vsyncpa [#allocation7], 0
    %17 = vsyncpa [#allocation10], 0
    %18 = vsyncpa [#allocation8], 0
    // Predicated region
    $region2: #{tpu_custom_call.1} parent=1 // pred_check
      _
    $region3: #{tpu_custom_call.1} parent=1 // pred_check_branch
      %20 = sbr.rel (0) target = $region5
    $region4: #{tpu_custom_call.1} parent=1 // pred_region
      %22 = vsyncadd [#allocation7], 0
      %s24 = sshll.u32 %s1, 4
      %s25 = int_to_ptr.hbm [resolvable:$true] %s24
      %s26 = sshll.u32 [#allocation6], 4
      %s27 = int_to_ptr.vmem [resolvable:$true] %s26
      %29 = dma.hbm_to_vmem [thread:$0]  %s25, 128, %s27, [#allocation7]
    $region5: #{tpu_custom_call.1} parent=1 // pred_fallthru
      _
    // Predicated region
    $region6: #{tpu_custom_call.1} parent=1 // pred_check
      _
    $region7: #{tpu_custom_call.1} parent=1 // pred_check_branch
      %31 = sbr.rel (0) target = $region9
    $region8: #{tpu_custom_call.1} parent=1 // pred_region
      %33 = vsyncadd [#allocation10], 0
      %s34 = sshll.u32 %s2, 4
      %s35 = int_to_ptr.hbm [resolvable:$true] %s34
      %s36 = sshll.u32 [#allocation9], 4
      %s37 = int_to_ptr.vmem [resolvable:$true] %s36
      %42 = dma.hbm_to_vmem [thread:$0]  %s35, 256, %s37, [#allocation10], 128, 128, 8
    $region9: #{tpu_custom_call.1} parent=1 // pred_fallthru
      _
    // Predicated region
    $region10: #{tpu_custom_call.1} parent=1 // pred_check
      _
    $region11: #{tpu_custom_call.1} parent=1 // pred_check_branch
      %44 = sbr.rel (0) target = $region13
    $region12: #{tpu_custom_call.1} parent=1 // pred_region
      %46 = dma.done [#allocation7], 128
    $region13: #{tpu_custom_call.1} parent=1 // pred_fallthru
      _
    // Predicated region
    $region14: #{tpu_custom_call.1} parent=1 // pred_check
      _
    $region15: #{tpu_custom_call.1} parent=1 // pred_check_branch
      %48 = sbr.rel (0) target = $region17
    $region16: #{tpu_custom_call.1} parent=1 // pred_region
      %50 = dma.done [#allocation10], 256
    $region17: #{tpu_custom_call.1} parent=1 // pred_fallthru
      _
    %s51 = smul.u32 0, 8
    %p52 = scmp.eq.s32.totalorder 0, 0
    // Predicated region
    $region18: #{tpu_custom_call.1} parent=1 // pred_check
      %p53 = pneg %p52
    $region19: #{tpu_custom_call.1} parent=1 // pred_check_branch
      %55 = sbr.rel (%p53) target = $region21
    $region20: #{tpu_custom_call.1} parent=1 // pred_region
      %s56 = scalar_lea.smem [#allocation3], 0
      %57 = sst [smem:[%s56]] 0.0
    $region21: #{tpu_custom_call.1} parent=1 // pred_fallthru
      _
    %s58 = sld [smem:[#allocation5 + %s51]]
    %s59 = scalar_lea.vmem [#allocation9], %s58
    %v60 = vld [vmem:[%s59] sm:$0x1]
    %vm61 = vcmask 253952
    %62 = vst.msk [vmem:[#allocation2] sm:$0x1] %vm61, %v60
    %s63 = sadd.s32 %s51, 1
    %s64 = sld [smem:[#allocation5 + %s63]]
    %s65 = scalar_lea.vmem [#allocation9], %s64
    %v66 = vld [vmem:[%s65] sm:$0x1]
    %67 = vst.msk [vmem:[#allocation2 + $0x1] sm:$0x1] %vm61, %v66
    %s68 = sadd.s32 %s51, 2
    %s69 = sld [smem:[#allocation5 + %s68]]
    %s70 = scalar_lea.vmem [#allocation9], %s69
    %v71 = vld [vmem:[%s70] sm:$0x1]
    %72 = vst.msk [vmem:[#allocation2 + $0x2] sm:$0x1] %vm61, %v71
    %s73 = sadd.s32 %s51, 3
    %s74 = sld [smem:[#allocation5 + %s73]]
    %s75 = scalar_lea.vmem [#allocation9], %s74
    %v76 = vld [vmem:[%s75] sm:$0x1]
    %77 = vst.msk [vmem:[#allocation2 + $0x3] sm:$0x1] %vm61, %v76
    %s78 = sadd.s32 %s51, 4
    %s79 = sld [smem:[#allocation5 + %s78]]
    %s80 = scalar_lea.vmem [#allocation9], %s79
    %v81 = vld [vmem:[%s80] sm:$0x1]
    %82 = vst.msk [vmem:[#allocation2 + $0x4] sm:$0x1] %vm61, %v81
    %s83 = sadd.s32 %s51, 5
    %s84 = sld [smem:[#allocation5 + %s83]]
    %s85 = scalar_lea.vmem [#allocation9], %s84
    %v86 = vld [vmem:[%s85] sm:$0x1]
    %87 = vst.msk [vmem:[#allocation2 + $0x5] sm:$0x1] %vm61, %v86
    %s88 = sadd.s32 %s51, 6
    %s89 = sld [smem:[#allocation5 + %s88]]
    %s90 = scalar_lea.vmem [#allocation9], %s89
    %v91 = vld [vmem:[%s90] sm:$0x1]
    %92 = vst.msk [vmem:[#allocation2 + $0x6] sm:$0x1] %vm61, %v91
    %s93 = sadd.s32 %s51, 7
    %s94 = sld [smem:[#allocation5 + %s93]]
    %s95 = scalar_lea.vmem [#allocation9], %s94
    %v96 = vld [vmem:[%s95] sm:$0x1]
    %97 = vst.msk [vmem:[#allocation2 + $0x7] sm:$0x1] %vm61, %v96
    %v98 = vld [vmem:[#allocation6] sm:$0xff]
    %v99 = vld [vmem:[#allocation2] sm:$0xff]
    %v100 = vsub.f32 %v98, %v99
    %v101 = vmul.f32 %v100, %v100
    %vm102 = vcmask 261120
    %v103 = vsel %vm102, %v101, 0.0
    %104 = vadd.xlane.f32.xlu0 %v103
    %v105 = vpop.xlane.xlu0 %104
    %v106 = vmax.f32 %v105, 1e-12
    %v107 = vmin.f32 %v106, 1e+12
    %v108 = vlaneseq
    %v109 = vshrl.u32 %v108, 7
    %v110 = vstv %s51
    %v111 = vadd.s32 %v109, %v110
    %vm112 = vcmp.lt.s32.totalorder %v111, 8
    %v113 = vsel %vm112, %v107, 0.0
    %s114 = sld [smem:[#allocation3]]
    %vm115 = vcmask 7168
    %v116 = vsel %vm115, %v113, 0.0
    %117 = vadd.xlane.f32.xlu0 %v116
    %v118 = vpop.xlane.xlu0 %117
    %v119 = vrot.slane %v118, 4
    %v120 = vadd.f32 %v118, %v119
    %v121 = vrot.slane %v120, 2
    %v122 = vadd.f32 %v120, %v121
    %v123 = vrot.slane %v122, 1
    %v124 = vadd.f32 %v122, %v123
    %s125 = vtos %v124
    %s126 = sadd.f32 %s114, %s125
    %s127 = scalar_lea.smem [#allocation3], 0
    %128 = sst [smem:[%s127]] %s126
    // Predicated region
    $region22: #{tpu_custom_call.1} parent=1 // pred_check
      %p129 = pneg %p52
    $region23: #{tpu_custom_call.1} parent=1 // pred_check_branch
      %131 = sbr.rel (%p129) target = $region25
    $region24: #{tpu_custom_call.1} parent=1 // pred_region
      %s132 = sld [smem:[#allocation3]]
      %s133 = sadd.f32 %s132, 7.2e-11
      %v134 = vrcp.pop 8.0
      %v135 = vmul.f32 8.0, %v134
      %v136 = vsub.f32 1.0, %v135
      %v137 = vmul.f32 %v134, %v136
      %v138 = vadd.f32 %v134, %v137
      %vm139 = vweird.f32 %v134
      %v140 = vsel %vm139, %v134, %v138
      %s141 = vtos %v140
      %s142 = smul.f32 %s133, %s141
      %s143 = scalar_lea.smem [#allocation11], 0
      %144 = sst [smem:[%s143]] %s142
    $region25: #{tpu_custom_call.1} parent=1 // pred_fallthru
      _
    // Predicated region
    $region26: #{tpu_custom_call.1} parent=1 // pred_check
      _
    $region27: #{tpu_custom_call.1} parent=1 // pred_check_branch
      %146 = sbr.rel (0) target = $region29
    $region28: #{tpu_custom_call.1} parent=1 // pred_region
      %148 = vsyncadd [#allocation8], 0
      %s150 = sshll.u32 %s3, 4
      %s151 = int_to_ptr.hbm [resolvable:$true] %s150
      %153 = dma.smem_to_hbm [#allocation11], 16, %s151, [#allocation8]
    $region29: #{tpu_custom_call.1} parent=1 // pred_fallthru
      _
    // Predicated region
    $region30: #{tpu_custom_call.1} parent=1 // pred_check
      _
    $region31: #{tpu_custom_call.1} parent=1 // pred_check_branch
      %155 = sbr.rel (0) target = $region33
    $region32: #{tpu_custom_call.1} parent=1 // pred_region
      %157 = dma.done [#allocation8], 16
    $region33: #{tpu_custom_call.1} parent=1 // pred_fallthru
      _
    %158 = sfence
    %159 = vsyncpa [#allocation7], 1
    %160 = vsyncpa [#allocation10], 1
    %161 = vsyncpa [#allocation8], 1

</llo_original>
